<compile_context>
chip_gen: v7x
topology: tpu7x:2x2x1
jax: 0.10.0
libtpu: 0.0.40
codegen_flags: <defaults>
</compile_context>

<pallas_src>
import functools

import jax
import jax.numpy as jnp
from jax.experimental import pallas as pl
from jax.experimental.pallas import tpu as pltpu


def _leaky(x):
    return jnp.where(x >= 0, x, 0.2 * x)


def _sigmoid(x):
    # exp runs on the EUP slot; exact reciprocal keeps 1e-5 accuracy.
    return pl.reciprocal(1.0 + jnp.exp(-x), approx=False)


def ca_layer_kernel(x_ref, p_ref, o_ref, *, r):
    # x_ref : (N, C, HW)   channels on sublanes, H*W on lanes (lane-dense)
    # p_ref : (C, 128)     packed params:
    #                        [:, 0:r]        = w1^T   (C, r)
    #                        [:, r:2r]       = w2     (C, r)
    #                        [:, 2r]         = b2     (C,)
    #                        [0, 2r+1:3r+1]  = b1     (r,)
    # o_ref : (N, C, HW)
    x = x_ref[...].astype(jnp.float32)                       # (N, C, HW)
    p = p_ref[...]                                            # (C, 128)
    hw = x.shape[2]

    w1t = p[:, 0:r]                                           # (C, r)
    w2 = p[:, r:2 * r]                                        # (C, r)
    b2 = p[:, 2 * r:2 * r + 1]                                # (C, 1)
    b1 = p[0:1, 2 * r + 1:3 * r + 1]                          # (1, r)

    # Global average pool over H*W (cross-lane reduce -> XLU).
    pooled = jnp.sum(x, axis=2, keepdims=True) * (1.0 / hw)   # (N, C, 1)

    # 1x1 conv C->r: broadcast-FMA + cross-sublane reduce, LeakyReLU(0.2).
    z = jnp.sum(w1t[None, :, :] * pooled, axis=1, keepdims=True)   # (N, 1, r)
    z = _leaky(z + b1[None, :, :])

    # 1x1 conv r->C: broadcast-FMA + reduce over r, then sigmoid (EUP exp).
    gate = jnp.sum(w2[None, :, :] * z, axis=2, keepdims=True)      # (N, C, 1)
    gate = _sigmoid(gate + b2[None, :, :])

    # Per-channel gating; (N, C, 1) lane-broadcast against (N, C, HW).
    o_ref[...] = (x * gate).astype(o_ref.dtype)


def ca_layer(x_nchw, w1, b1, w2, b2):
    """x_nchw: (N, C, H, W); w1: (R, C); b1: (R,); w2: (C, R); b2: (C,)."""
    N, C, H, W = x_nchw.shape
    R = w1.shape[0]
    HW = H * W
    LANES = 128
    assert 3 * R + 1 <= LANES

    # Free reshape of contiguous trailing dims: lane axis becomes H*W.
    x2 = x_nchw.reshape(N, C, HW)

    # Pack all four tiny parameters into one lane-dense slab (single DMA).
    slab = jnp.zeros((C, LANES), jnp.float32)
    slab = slab.at[:, 0:R].set(jnp.transpose(w1).astype(jnp.float32))
    slab = slab.at[:, R:2 * R].set(w2.astype(jnp.float32))
    slab = slab.at[:, 2 * R].set(b2.astype(jnp.float32))
    slab = slab.at[0, 2 * R + 1:3 * R + 1].set(b1.astype(jnp.float32))

    flops = N * (C * HW              # pooling adds
                 + 4 * C * R         # two tiny 1x1 convs (mul + add each)
                 + C * HW)           # gating multiply
    bytes_accessed = 4 * (2 * x2.size + slab.size)
    cost = pl.CostEstimate(flops=flops, transcendentals=N * C,
                           bytes_accessed=bytes_accessed)

    kernel = functools.partial(ca_layer_kernel, r=R)

    out2 = pl.pallas_call(
        kernel,
        out_shape=jax.ShapeDtypeStruct((N, C, HW), x_nchw.dtype),
        grid_spec=pltpu.PrefetchScalarGridSpec(
            num_scalar_prefetch=0,
            grid=(1,),                                   # single step: whole batch
            in_specs=[
                pl.BlockSpec((N, C, HW), lambda i: (0, 0, 0)),
                pl.BlockSpec((C, LANES), lambda i: (0, 0)),
            ],
            out_specs=pl.BlockSpec((N, C, HW), lambda i: (0, 0, 0)),
        ),
        compiler_params=pltpu.CompilerParams(
            dimension_semantics=("arbitrary",)),
        cost_estimate=cost,
    )(x2, slab)

    return out2.reshape(N, C, H, W)


def reference_forward(x, w1, b1, w2, b2):
    """Pure-JAX reference matching the PyTorch CALayer."""
    y = jnp.mean(x, axis=(2, 3))                       # (N, C)
    z = y @ jnp.transpose(w1) + b1                     # (N, R)
    z = _leaky(z)
    g = z @ jnp.transpose(w2) + b2                     # (N, C)
    g = 1.0 / (1.0 + jnp.exp(-g))
    return x * g[:, :, None, None]


if __name__ == "__main__":
    # CALayer(channel=16, bias=True); input x: NCHW (2, 16, 16, 16).
    N, C, H, W = 2, 16, 16, 16
    R = 4                                   # fixed squeeze width inside CALayer

    key = jax.random.PRNGKey(0)
    kx, k1, k2, k3, k4 = jax.random.split(key, 5)

    x = jax.random.normal(kx, (N, C, H, W), dtype=jnp.float32)
    w1 = jax.random.normal(k1, (R, C), dtype=jnp.float32) * 0.2   # Conv2d(C, 4, 1).weight
    b1 = jax.random.normal(k2, (R,), dtype=jnp.float32) * 0.1
    w2 = jax.random.normal(k3, (C, R), dtype=jnp.float32) * 0.2   # Conv2d(4, C, 1).weight
    b2 = jax.random.normal(k4, (C,), dtype=jnp.float32) * 0.1

    out = ca_layer(x, w1, b1, w2, b2)
    jax.block_until_ready(out)

    ref = reference_forward(x, w1, b1, w2, b2)
    assert out.shape == (N, C, H, W)
    assert jnp.allclose(out, ref, rtol=1e-5, atol=1e-5), "mismatch vs JAX reference"

    print("KERNEL_OK")
</pallas_src>

<mosaic_0001>
module attributes {stable_mosaic.version = 11 : i64} {
  func.func @ca_layer_kernel(%arg0: i32, %arg1: memref<2x16x256xf32, #tpu.memory_space<vmem>>, %arg2: memref<16x128xf32, #tpu.memory_space<vmem>>, %arg3: memref<2x16x256xf32, #tpu.memory_space<vmem>>) attributes {dimension_semantics = [#tpu.dimension_semantics<arbitrary>], iteration_bounds = array<i64: 1>, scalar_prefetch = 0 : i64, scratch_operands = 0 : i64, tpu.core_type = #tpu.core_type<tc>, window_params = [{pipeline_mode = #tpu.pipeline_mode<synchronous>, transform_indices = @transform_0, window_bounds = array<i64: 2, 16, 256>}, {pipeline_mode = #tpu.pipeline_mode<synchronous>, transform_indices = @transform_1, window_bounds = array<i64: 16, 128>}, {pipeline_mode = #tpu.pipeline_mode<synchronous>, transform_indices = @transform_2, window_bounds = array<i64: 2, 16, 256>}]} {
    %c0 = arith.constant 0 : index
    %c0_0 = arith.constant 0 : index
    %c0_1 = arith.constant 0 : index
    %0 = vector.load %arg1[%c0, %c0_0, %c0_1] : memref<2x16x256xf32, #tpu.memory_space<vmem>>, vector<2x16x256xf32>
    %c0_2 = arith.constant 0 : index
    %c0_3 = arith.constant 0 : index
    %1 = vector.load %arg2[%c0_2, %c0_3] : memref<16x128xf32, #tpu.memory_space<vmem>>, vector<16x128xf32>
    %2 = vector.extract_strided_slice %1 {offsets = [0, 0], sizes = [16, 4], strides = [1, 1]} : vector<16x128xf32> to vector<16x4xf32>
    %3 = vector.extract_strided_slice %1 {offsets = [0, 4], sizes = [16, 4], strides = [1, 1]} : vector<16x128xf32> to vector<16x4xf32>
    %4 = vector.extract_strided_slice %1 {offsets = [0, 8], sizes = [16, 1], strides = [1, 1]} : vector<16x128xf32> to vector<16x1xf32>
    %5 = vector.extract_strided_slice %1 {offsets = [0, 9], sizes = [1, 4], strides = [1, 1]} : vector<16x128xf32> to vector<1x4xf32>
    %cst = arith.constant dense<0.000000e+00> : vector<2x16xf32>
    %6 = vector.multi_reduction <add>, %0, %cst [2] : vector<2x16x256xf32> to vector<2x16xf32>
    %7 = vector.shape_cast %6 : vector<2x16xf32> to vector<2x16x1xf32>
    %cst_4 = arith.constant 3.906250e-03 : f32
    %8 = vector.broadcast %cst_4 : f32 to vector<2x16x1xf32>
    %9 = arith.mulf %7, %8 : vector<2x16x1xf32>
    %10 = vector.shape_cast %2 : vector<16x4xf32> to vector<1x16x4xf32>
    %11 = vector.broadcast %10 : vector<1x16x4xf32> to vector<2x16x4xf32>
    %12 = vector.broadcast %9 : vector<2x16x1xf32> to vector<2x16x4xf32>
    %13 = arith.mulf %11, %12 : vector<2x16x4xf32>
    %cst_5 = arith.constant dense<0.000000e+00> : vector<2x4xf32>
    %14 = vector.multi_reduction <add>, %13, %cst_5 [1] : vector<2x16x4xf32> to vector<2x4xf32>
    %15 = vector.shape_cast %14 : vector<2x4xf32> to vector<2x1x4xf32>
    %16 = vector.shape_cast %5 : vector<1x4xf32> to vector<1x1x4xf32>
    %17 = vector.broadcast %16 : vector<1x1x4xf32> to vector<2x1x4xf32>
    %18 = arith.addf %15, %17 : vector<2x1x4xf32>
    %cst_6 = arith.constant 0.000000e+00 : f32
    %19 = vector.broadcast %cst_6 : f32 to vector<2x1x4xf32>
    %20 = arith.cmpf oge, %18, %19 : vector<2x1x4xf32>
    %cst_7 = arith.constant 2.000000e-01 : f32
    %21 = vector.broadcast %cst_7 : f32 to vector<2x1x4xf32>
    %22 = arith.mulf %21, %18 : vector<2x1x4xf32>
    %23 = arith.select %20, %18, %22 : vector<2x1x4xi1>, vector<2x1x4xf32>
    %24 = vector.shape_cast %3 : vector<16x4xf32> to vector<1x16x4xf32>
    %25 = vector.broadcast %24 : vector<1x16x4xf32> to vector<2x16x4xf32>
    %26 = vector.broadcast %23 : vector<2x1x4xf32> to vector<2x16x4xf32>
    %27 = arith.mulf %25, %26 : vector<2x16x4xf32>
    %cst_8 = arith.constant dense<0.000000e+00> : vector<2x16xf32>
    %28 = vector.multi_reduction <add>, %27, %cst_8 [2] : vector<2x16x4xf32> to vector<2x16xf32>
    %29 = vector.shape_cast %28 : vector<2x16xf32> to vector<2x16x1xf32>
    %30 = vector.shape_cast %4 : vector<16x1xf32> to vector<1x16x1xf32>
    %31 = vector.broadcast %30 : vector<1x16x1xf32> to vector<2x16x1xf32>
    %32 = arith.addf %29, %31 : vector<2x16x1xf32>
    %cst_9 = arith.constant 0.000000e+00 : f32
    %33 = vector.broadcast %cst_9 : f32 to vector<2x16x1xf32>
    %34 = arith.subf %33, %32 : vector<2x16x1xf32>
    %35 = math.exp %34 : vector<2x16x1xf32>
    %cst_10 = arith.constant 1.000000e+00 : f32
    %36 = vector.broadcast %cst_10 : f32 to vector<2x16x1xf32>
    %37 = arith.addf %36, %35 : vector<2x16x1xf32>
    %38 = tpu.reciprocal %37 : vector<2x16x1xf32> -> vector<2x16x1xf32>
    %39 = vector.broadcast %38 : vector<2x16x1xf32> to vector<2x16x256xf32>
    %40 = arith.mulf %0, %39 : vector<2x16x256xf32>
    %c0_11 = arith.constant 0 : index
    %c0_12 = arith.constant 0 : index
    %c0_13 = arith.constant 0 : index
    %41 = vector.load %arg3[%c0_11, %c0_12, %c0_13] : memref<2x16x256xf32, #tpu.memory_space<vmem>>, vector<2x16x256xf32>
    tpu.vector_store %arg3[%c0_11, %c0_12, %c0_13], %40 {strides = array<i32>} : memref<2x16x256xf32, #tpu.memory_space<vmem>>, vector<2x16x256xf32>,
    return
  }
  func.func @transform_0(%arg0: i32) -> (i32, i32, i32) {
    %c0_i32 = arith.constant 0 : i32
    %c0_i32_0 = arith.constant 0 : i32
    %c0_i32_1 = arith.constant 0 : i32
    %c0_i32_2 = arith.constant 0 : i32
    return %c0_i32, %c0_i32_0, %c0_i32_1 : i32, i32, i32
  }
  func.func @transform_1(%arg0: i32) -> (i32, i32) {
    %c0_i32 = arith.constant 0 : i32
    %c0_i32_0 = arith.constant 0 : i32
    %c0_i32_1 = arith.constant 0 : i32
    return %c0_i32, %c0_i32_0 : i32, i32
  }
  func.func @transform_2(%arg0: i32) -> (i32, i32, i32) {
    %c0_i32 = arith.constant 0 : i32
    %c0_i32_0 = arith.constant 0 : i32
    %c0_i32_1 = arith.constant 0 : i32
    %c0_i32_2 = arith.constant 0 : i32
    return %c0_i32, %c0_i32_0, %c0_i32_1 : i32, i32, i32
  }
}

</mosaic_0001>

<llo_original>
// kernel: tpu_custom_call.1
$region0: #{tpu_custom_call.1}
  #allocation0 [shape = 'u32[]', space=smem, size = 0x4, offset = 0x4, fixed_abs, tag = 'smem constant byte address 0x4 - core index']
  #allocation1 [shape = 'u32[144,128]{1,0:T(1,128)}', space=vmem, size = 0x12000, scoped, tag = 'internal scratch']
  %s0 = inlined_call_operand.hbm [shape: f32[2,16,256], index: 0, kind: input, shape index: {}]
  %s1 = inlined_call_operand.hbm [shape: f32[16,128], index: 1, kind: input, shape index: {}]
  %s2 = inlined_call_operand.hbm [shape: f32[2,16,256], index: 2, kind: output, shape index: {}]
  %s3 = sld [smem:[#allocation0]]
  $region26: #{tpu_custom_call.1} parent=0
    _
  %s5 = ssub.s32 1, %s3
  %s6 = scalar_select 0, %s5, %s3
  $region1: #{tpu_custom_call.1} parent=0
    #allocation2 [shape = 'u8[32768]{0}', space=vmem, size = 0x8000, scoped, tag = 'input window, operand 0, single buffered']
    #allocation3 [shape = 's32[1]{0}', space=sflag, size = 0x4, scoped, tag = 'scoped memory for tpu_custom_call.1']
    #allocation4 [shape = 's32[1]{0}', space=sflag, size = 0x4, scoped, tag = 'scoped memory for tpu_custom_call.1']
    #allocation5 [shape = 'u8[8192]{0}', space=vmem, size = 0x2000, scoped, tag = 'input window, operand 1, single buffered']
    #allocation6 [shape = 's32[1]{0}', space=sflag, size = 0x4, scoped, tag = 'scoped memory for tpu_custom_call.1']
    #allocation7 [shape = 'u8[32768]{0}', space=vmem, size = 0x8000, scoped, tag = 'output window, operand 0, single buffered']
    %7 = vsyncpa [#allocation3], 0
    %8 = vsyncpa [#allocation6], 0
    %9 = vsyncpa [#allocation4], 0
    // Predicated region
    $region2: #{tpu_custom_call.1} parent=1 // pred_check
      _
    $region3: #{tpu_custom_call.1} parent=1 // pred_check_branch
      %11 = sbr.rel (0) target = $region5
    $region4: #{tpu_custom_call.1} parent=1 // pred_region
      %s13 = ssub.s32 1024, 1024
      %14 = vsyncadd [#allocation3], %s13
      %s15 = sshll.u32 [#allocation2], 4
      %s16 = int_to_ptr.vmem [resolvable:$true] %s15
      %21 = dma.hbm_to_vmem [thread:$0]  %s0, 1024, %s16, [#allocation3], 256, 256, 16
    $region5: #{tpu_custom_call.1} parent=1 // pred_fallthru
      _
    // Predicated region
    $region6: #{tpu_custom_call.1} parent=1 // pred_check
      _
    $region7: #{tpu_custom_call.1} parent=1 // pred_check_branch
      %23 = sbr.rel (0) target = $region9
    $region8: #{tpu_custom_call.1} parent=1 // pred_region
      %s25 = ssub.s32 256, 256
      %26 = vsyncadd [#allocation6], %s25
      %s27 = sshll.u32 [#allocation5], 4
      %s28 = int_to_ptr.vmem [resolvable:$true] %s27
      %33 = dma.hbm_to_vmem [thread:$0]  %s1, 256, %s28, [#allocation6], 128, 128, 8
    $region9: #{tpu_custom_call.1} parent=1 // pred_fallthru
      _
    // Predicated region
    $region10: #{tpu_custom_call.1} parent=1 // pred_check
      _
    $region11: #{tpu_custom_call.1} parent=1 // pred_check_branch
      %35 = sbr.rel (0) target = $region13
    $region12: #{tpu_custom_call.1} parent=1 // pred_region
      %36 = dma.done [#allocation3], 1024
    $region13: #{tpu_custom_call.1} parent=1 // pred_fallthru
      _
    // Predicated region
    $region14: #{tpu_custom_call.1} parent=1 // pred_check
      _
    $region15: #{tpu_custom_call.1} parent=1 // pred_check_branch
      %38 = sbr.rel (0) target = $region17
    $region16: #{tpu_custom_call.1} parent=1 // pred_region
      %39 = dma.done [#allocation6], 256
    $region17: #{tpu_custom_call.1} parent=1 // pred_fallthru
      _
    %v40 = vld [vmem:[#allocation2] sm:$0xff]
    %v41 = vld [vmem:[#allocation2 + $0x8] sm:$0xff]
    %v42 = vld [vmem:[#allocation2 + $0x10] sm:$0xff]
    %v43 = vld [vmem:[#allocation2 + $0x18] sm:$0xff]
    %v44 = vld [vmem:[#allocation2 + $0x20] sm:$0xff]
    %v45 = vld [vmem:[#allocation2 + $0x28] sm:$0xff]
    %v46 = vld [vmem:[#allocation2 + $0x30] sm:$0xff]
    %v47 = vld [vmem:[#allocation2 + $0x38] sm:$0xff]
    %v48 = vld [vmem:[#allocation5] sm:$0xff]
    %v49 = vld [vmem:[#allocation5 + $0x8] sm:$0xff]
    %v50 = vadd.f32 %v40, %v41
    %51 = vadd.xlane.f32.xlu0 %v50
    %v52 = vpop.xlane.xlu0 %51
    %v53 = vadd.f32 %v42, %v43
    %54 = vadd.xlane.f32.xlu0 %v53
    %v55 = vpop.xlane.xlu0 %54
    %v56 = vadd.f32 %v44, %v45
    %57 = vadd.xlane.f32.xlu0 %v56
    %v58 = vpop.xlane.xlu0 %57
    %v59 = vadd.f32 %v46, %v47
    %60 = vadd.xlane.f32.xlu0 %v59
    %v61 = vpop.xlane.xlu0 %60
    %v62 = vmul.f32 %v52, 0.00390625
    %v63 = vmul.f32 %v55, 0.00390625
    %v64 = vmul.f32 %v58, 0.00390625
    %v65 = vmul.f32 %v61, 0.00390625
    %v66 = vmul.f32 %v48, %v62
    %v67 = vmul.f32 %v49, %v63
    %v68 = vmul.f32 %v48, %v64
    %v69 = vmul.f32 %v49, %v65
    %vm70 = vcmask 31744
    %v71 = vsel %vm70, %v66, 0.0
    %v72 = vsel %vm70, %v67, 0.0
    %v73 = vadd.f32 %v71, %v72
    %v74 = vrot.slane %v73, 4
    %v75 = vadd.f32 %v73, %v74
    %v76 = vrot.slane %v75, 2
    %v77 = vadd.f32 %v75, %v76
    %v78 = vrot.slane %v77, 1
    %v79 = vadd.f32 %v77, %v78
    %v80 = vsel %vm70, %v68, 0.0
    %v81 = vsel %vm70, %v69, 0.0
    %v82 = vadd.f32 %v80, %v81
    %v83 = vrot.slane %v82, 4
    %v84 = vadd.f32 %v82, %v83
    %v85 = vrot.slane %v84, 2
    %v86 = vadd.f32 %v84, %v85
    %v87 = vrot.slane %v86, 1
    %v88 = vadd.f32 %v86, %v87
    %90 = vrot.lane.b32.xlu0 %v48, 119
    %v91 = vpop.permute.xlu0 %90
    %v93 = vadd.f32 %v79, %v91
    %v94 = vadd.f32 %v88, %v91
    %vm95 = vcmp.ge.f32.partialorder %v93, 0.0
    %vm96 = vcmp.ge.f32.partialorder %v94, 0.0
    %v97 = vmul.f32 %v93, 0.2
    %v98 = vmul.f32 %v94, 0.2
    %v99 = vsel %vm95, %v93, %v97
    %v100 = vsel %vm96, %v94, %v98
    %v101 = vlaneseq
    %v102 = vshrl.u32 %v101, 7
    %v103 = vsub.s32 0, %v102
    %v104 = vrot.slane %v99, %v103
    %v105 = vlaneseq
    %v106 = vshrl.u32 %v105, 7
    %v107 = vsub.s32 0, %v106
    %v108 = vrot.slane %v100, %v107
    %111 = vrot.lane.b32.xlu0 %v104, 4
    %v112 = vpop.permute.xlu0 %111
    %113 = vrot.lane.b32.xlu0 %v108, 4
    %v114 = vpop.permute.xlu0 %113
    %v117 = vmul.f32 %v48, %v112
    %v118 = vmul.f32 %v49, %v112
    %v119 = vmul.f32 %v48, %v114
    %v120 = vmul.f32 %v49, %v114
    %125 = vrot.lane.b32.xlu0 %v117, 124
    %v126 = vpop.permute.xlu0 %125
    %127 = vrot.lane.b32.xlu0 %v118, 124
    %v128 = vpop.permute.xlu0 %127
    %129 = vrot.lane.b32.xlu0 %v119, 124
    %v130 = vpop.permute.xlu0 %129
    %131 = vrot.lane.b32.xlu0 %v120, 124
    %v132 = vpop.permute.xlu0 %131
    %v137 = vsel %vm70, %v126, 0.0
    %138 = vadd.xlane.f32.xlu0 %v137
    %v139 = vpop.xlane.xlu0 %138
    %v140 = vsel %vm70, %v128, 0.0
    %141 = vadd.xlane.f32.xlu0 %v140
    %v142 = vpop.xlane.xlu0 %141
    %v143 = vsel %vm70, %v130, 0.0
    %144 = vadd.xlane.f32.xlu0 %v143
    %v145 = vpop.xlane.xlu0 %144
    %v146 = vsel %vm70, %v132, 0.0
    %147 = vadd.xlane.f32.xlu0 %v146
    %v148 = vpop.xlane.xlu0 %147
    %v149 = vadd.f32 %v139, %v48
    %v150 = vadd.f32 %v142, %v49
    %v151 = vadd.f32 %v145, %v48
    %v152 = vadd.f32 %v148, %v49
    %v153 = vsub.f32 0.0, %v149
    %v154 = vsub.f32 0.0, %v150
    %v155 = vsub.f32 0.0, %v151
    %v156 = vsub.f32 0.0, %v152
    %v157 = vmul.f32 %v153, 1.442695
    %v158 = vpow.pop %v157
    %v159 = vmul.f32 %v154, 1.442695
    %v160 = vpow.pop %v159
    %v161 = vmul.f32 %v155, 1.442695
    %v162 = vpow.pop %v161
    %v163 = vmul.f32 %v156, 1.442695
    %v164 = vpow.pop %v163
    %v165 = vadd.f32 %v158, 1.0
    %v166 = vadd.f32 %v160, 1.0
    %v167 = vadd.f32 %v162, 1.0
    %v168 = vadd.f32 %v164, 1.0
    %v169 = vrcp.pop %v165
    %v170 = vrcp.pop %v166
    %v171 = vrcp.pop %v167
    %v172 = vrcp.pop %v168
    %174 = vset.pattern.permute.xlu0 8
    %175 = vperm.xlu0 %174, %v169
    %v176 = vpop.permute.xlu0 %175
    %179 = vset.pattern.permute.xlu0 8
    %180 = vperm.xlu0 %179, %v170
    %v181 = vpop.permute.xlu0 %180
    %184 = vset.pattern.permute.xlu0 8
    %185 = vperm.xlu0 %184, %v171
    %v186 = vpop.permute.xlu0 %185
    %189 = vset.pattern.permute.xlu0 8
    %190 = vperm.xlu0 %189, %v172
    %v191 = vpop.permute.xlu0 %190
    %v193 = vmul.f32 %v40, %v176
    %v194 = vmul.f32 %v41, %v176
    %v195 = vmul.f32 %v42, %v181
    %v196 = vmul.f32 %v43, %v181
    %v197 = vmul.f32 %v44, %v186
    %v198 = vmul.f32 %v45, %v186
    %v199 = vmul.f32 %v46, %v191
    %v200 = vmul.f32 %v47, %v191
    %201 = vst [vmem:[#allocation7] sm:$0xff] %v193
    %202 = vst [vmem:[#allocation7 + $0x8] sm:$0xff] %v194
    %203 = vst [vmem:[#allocation7 + $0x10] sm:$0xff] %v195
    %204 = vst [vmem:[#allocation7 + $0x18] sm:$0xff] %v196
    %205 = vst [vmem:[#allocation7 + $0x20] sm:$0xff] %v197
    %206 = vst [vmem:[#allocation7 + $0x28] sm:$0xff] %v198
    %207 = vst [vmem:[#allocation7 + $0x30] sm:$0xff] %v199
    %208 = vst [vmem:[#allocation7 + $0x38] sm:$0xff] %v200
    // Predicated region
    $region18: #{tpu_custom_call.1} parent=1 // pred_check
      _
    $region19: #{tpu_custom_call.1} parent=1 // pred_check_branch
      %210 = sbr.rel (0) target = $region21
    $region20: #{tpu_custom_call.1} parent=1 // pred_region
      %s212 = ssub.s32 1024, 1024
      %213 = vsyncadd [#allocation4], %s212
      %s214 = sshll.u32 [#allocation7], 4
      %s215 = int_to_ptr.vmem [resolvable:$true] %s214
      %220 = dma.vmem_to_hbm [thread:$0]  %s215, 1024, %s2, [#allocation4], 256, 256, 16
    $region21: #{tpu_custom_call.1} parent=1 // pred_fallthru
      _
    // Predicated region
    $region22: #{tpu_custom_call.1} parent=1 // pred_check
      _
    $region23: #{tpu_custom_call.1} parent=1 // pred_check_branch
      %222 = sbr.rel (0) target = $region25
    $region24: #{tpu_custom_call.1} parent=1 // pred_region
      %223 = dma.done [#allocation4], 1024
    $region25: #{tpu_custom_call.1} parent=1 // pred_fallthru
      _
    %224 = vsyncpa [#allocation3], 1
    %225 = vsyncpa [#allocation6], 1
    %226 = vsyncpa [#allocation4], 1

</llo_original>
